<compile_context>
chip_gen: v7x
topology: tpu7x:2x2x1
jax: 0.10.0
libtpu: 0.0.40
codegen_flags: <defaults>
</compile_context>

<pallas_src>
import jax
import jax.numpy as jnp
from jax.experimental import pallas as pl
from jax.experimental.pallas import tpu as pltpu


def _ffn_kernel(x_ref, w1_ref, b1_ref, w2_ref, b2_ref, o_ref, acc_ref):
    """One (block_s, Hd) row tile x one pf slab of the intermediate dim.

    grid = (num_row_blocks, num_pf_blocks); the pf axis is fc_2's reduction.

    x_ref:   (block_s, Hd)       f32   (same block for every pf step)
    w1_ref:  (Hd, pf_block)      bf16
    b1_ref:  (1, pf_block)       f32
    w2_ref:  (pf_block, Hd)      bf16
    b2_ref:  (1, Hd)             f32
    o_ref:   (block_s, Hd)       bf16  (same block across pf -> stored once)
    acc_ref: (block_s, Hd)       f32   VMEM scratch accumulator
    """
    p = pl.program_id(1)

    @pl.when(p == 0)
    def _():
        acc_ref[...] = jnp.zeros_like(acc_ref)

    # Cast the f32 activation tile to bf16 on the VPU (no wrapper-side cast /
    # extra HBM pass), then fc_1 for this pf slab on the MXU with f32 accum.
    x = x_ref[...].astype(jnp.bfloat16)
    h = jnp.dot(x, w1_ref[...], preferred_element_type=jnp.float32) + b1_ref[...]
    h = jnp.maximum(h, 0.0)                       # ReLU
    # TODO(synk): dropout is identity here (eval-mode semantics); training-mode
    # parity would need pltpu.prng_seed/prng_random_bits masking + 1/(1-p).

    # fc_2 partial product for this pf slab, accumulated in f32.
    acc_ref[...] += jnp.dot(h.astype(jnp.bfloat16), w2_ref[...],
                            preferred_element_type=jnp.float32)

    @pl.when(p == pl.num_programs(1) - 1)
    def _():
        o_ref[...] = (acc_ref[...] + b2_ref[...]).astype(o_ref.dtype)


def _vmem_budget():
    """Generation-aware scoped-VMEM limit (bytes) and tile budget."""
    try:
        cap = int(pltpu.get_tpu_info().vmem_capacity_bytes)
    except Exception:
        cap = 64 * 1024 * 1024        # conservative (v7x-sized) fallback
    # ~85% of physical, capped at 112 MiB (v5e/v6e) -> ~54 MiB on v7x.
    vmem_limit = min(int(0.85 * cap), 112 * 1024 * 1024)
    budget = int(0.75 * vmem_limit)   # headroom for compiler temporaries
    return vmem_limit, budget


def _pick_tiles(n_rows, hd, pf, budget):
    """Choose (block_s, pf_block) so the pipelined footprint fits `budget`."""
    def footprint(bs, pb):
        return (2 * bs * hd * 4        # x tiles (f32, double-buffered)
                + 2 * bs * hd * 2      # out tiles (bf16, double-buffered)
                + 2 * hd * pb * 2      # W1 slabs (bf16, double-buffered)
                + 2 * pb * hd * 2      # W2 slabs (bf16, double-buffered)
                + 2 * (pb + hd) * 4    # biases (f32)
                + bs * hd * 4          # f32 accumulator scratch
                + bs * pb * 6          # (block_s, pf_block) intermediate
                + bs * hd * 2)         # bf16 copy of x

    row_cands = [c for c in (1024, 512, 256, 128) if c <= n_rows] or [n_rows]
    # pf_block must divide Pf exactly (the pf axis is a reduction; no OOB pad).
    pf_cands = [c for c in (2048, 1024, 512, 256, 128) if pf % c == 0] or [pf]
    for bs in row_cands:
        for pb in pf_cands:
            if footprint(bs, pb) <= budget:
                return bs, pb
    return row_cands[-1], pf_cands[-1]


def positionwise_feedforward(x, params, out_dtype=jnp.bfloat16):
    """x: [B, S, hid].  Matches the PyTorch module's forward in eval mode.

    `params` should come from prepare_params(): W1/W2 already bf16,
    biases f32 rows of shape (1, out).
    """
    B, S, Hd = x.shape
    w1, b1 = params["w1"], params["b1"]   # (Hd, Pf) bf16, (1, Pf) f32
    w2, b2 = params["w2"], params["b2"]   # (Pf, Hd) bf16, (1, Hd) f32
    Pf = w1.shape[1]
    assert w1.shape == (Hd, Pf) and w2.shape == (Pf, Hd)
    assert b1.shape == (1, Pf) and b2.shape == (1, Hd)

    # Flatten rows: the reshape is free (row-major contiguous).
    N = B * S
    x2 = x.reshape(N, Hd)

    vmem_limit, budget = _vmem_budget()
    block_s, pf_block = _pick_tiles(N, Hd, Pf, budget)

    n_row_blocks = pl.cdiv(N, block_s)        # masked tail tile if uneven
    n_pf_blocks = Pf // pf_block
    grid = (n_row_blocks, n_pf_blocks)

    x_spec = pl.BlockSpec((block_s, Hd), lambda r, p: (r, 0))     # resident over pf
    w1_spec = pl.BlockSpec((Hd, pf_block), lambda r, p: (0, p))
    b1_spec = pl.BlockSpec((1, pf_block), lambda r, p: (0, p))
    w2_spec = pl.BlockSpec((pf_block, Hd), lambda r, p: (p, 0))
    b2_spec = pl.BlockSpec((1, Hd), lambda r, p: (0, 0))
    out_spec = pl.BlockSpec((block_s, Hd), lambda r, p: (r, 0))   # written at last pf step

    # Advisory cost so XLA can overlap neighbouring ops with this call.
    flops = 4 * N * Hd * Pf                              # two matmuls, 2 flop/MAC
    bytes_accessed = (N * Hd * 4                          # x read (f32)
                      + N * Hd * 2                        # out write (bf16)
                      + int(n_row_blocks) * 2 * Hd * Pf * 2   # W1+W2 streamed per row block
                      + (Pf + Hd) * 4)                    # biases
    cost = pl.CostEstimate(flops=flops, transcendentals=0,
                           bytes_accessed=bytes_accessed)

    out2 = pl.pallas_call(
        _ffn_kernel,
        out_shape=jax.ShapeDtypeStruct((N, Hd), out_dtype),
        grid_spec=pltpu.PrefetchScalarGridSpec(
            num_scalar_prefetch=0,
            grid=grid,
            in_specs=[x_spec, w1_spec, b1_spec, w2_spec, b2_spec],
            out_specs=out_spec,
            scratch_shapes=[pltpu.VMEM((block_s, Hd), jnp.float32)],
        ),
        compiler_params=pltpu.CompilerParams(
            dimension_semantics=("parallel", "arbitrary"),
            vmem_limit_bytes=vmem_limit),
        cost_estimate=cost,
    )(x2, w1, b1, w2, b2)

    return out2.reshape(B, S, Hd)


def init_params(key, hid_dim, pf_dim):
    """Deterministic f32 init mirroring Conv1d(hid, pf, 1) / Conv1d(pf, hid, 1).

    Weights stored pre-transposed as [in, out] so the kernel does x @ W + b.
    Biases stored as (1, out) rows for a TPU-friendly 2D layout.
    """
    ks = jax.random.split(key, 4)
    b1_bound = 1.0 / jnp.sqrt(hid_dim)   # fan_in of fc_1 = hid_dim * 1
    b2_bound = 1.0 / jnp.sqrt(pf_dim)    # fan_in of fc_2 = pf_dim * 1
    return {
        "w1": jax.random.uniform(ks[0], (hid_dim, pf_dim), jnp.float32,
                                 -b1_bound, b1_bound),
        "b1": jax.random.uniform(ks[1], (1, pf_dim), jnp.float32,
                                 -b1_bound, b1_bound),
        "w2": jax.random.uniform(ks[2], (pf_dim, hid_dim), jnp.float32,
                                 -b2_bound, b2_bound),
        "b2": jax.random.uniform(ks[3], (1, hid_dim), jnp.float32,
                                 -b2_bound, b2_bound),
    }


def prepare_params(params_f32):
    """One-time weight downcast to bf16 (do NOT repeat per forward call)."""
    return {
        "w1": params_f32["w1"].astype(jnp.bfloat16),
        "b1": params_f32["b1"],
        "w2": params_f32["w2"].astype(jnp.bfloat16),
        "b2": params_f32["b2"],
    }


def reference_ffn(x, params):
    """Pure-JAX (f32) reference mirroring the PyTorch forward in eval mode."""
    h = jnp.maximum(x @ params["w1"] + params["b1"], 0.0)
    return h @ params["w2"] + params["b2"]


if __name__ == "__main__":
    B, S, HID, PF = 2, 8, 32, 64

    root = jax.random.PRNGKey(0)
    kx, kp = jax.random.split(root, 2)
    x = jax.random.normal(kx, (B, S, HID), jnp.float32)
    params = init_params(kp, HID, PF)          # f32 reference params
    kparams = prepare_params(params)           # bf16 weights, cast once

    out = positionwise_feedforward(x, kparams)
    out = jax.block_until_ready(out)

    ref = reference_ffn(x, params)
    assert out.shape == (B, S, HID)
    # bf16 operands + bf16 output -> loosened tolerance vs. the f32 reference.
    assert jnp.allclose(out.astype(jnp.float32), ref, atol=5e-2, rtol=5e-2), \
        "mismatch vs reference"

    print("KERNEL_OK")
</pallas_src>

<mosaic_0001>
module attributes {stable_mosaic.version = 11 : i64} {
  func.func @_ffn_kernel(%arg0: i32, %arg1: i32, %arg2: memref<16x32xf32, #tpu.memory_space<vmem>>, %arg3: memref<32x64xbf16, #tpu.memory_space<vmem>>, %arg4: memref<1x64xf32, #tpu.memory_space<vmem>>, %arg5: memref<64x32xbf16, #tpu.memory_space<vmem>>, %arg6: memref<1x32xf32, #tpu.memory_space<vmem>>, %arg7: memref<16x32xbf16, #tpu.memory_space<vmem>>, %arg8: memref<16x32xf32, #tpu.memory_space<vmem>>) attributes {dimension_semantics = [#tpu.dimension_semantics<parallel>, #tpu.dimension_semantics<arbitrary>], iteration_bounds = array<i64: 1, 1>, scalar_prefetch = 0 : i64, scratch_operands = 1 : i64, tpu.core_type = #tpu.core_type<tc>, window_params = [{transform_indices = @transform_0, window_bounds = array<i64: 16, 32>}, {transform_indices = @transform_1, window_bounds = array<i64: 32, 64>}, {transform_indices = @transform_2, window_bounds = array<i64: 1, 64>}, {transform_indices = @transform_3, window_bounds = array<i64: 64, 32>}, {pipeline_mode = #tpu.pipeline_mode<synchronous>, transform_indices = @transform_4, window_bounds = array<i64: 1, 32>}, {transform_indices = @transform_5, window_bounds = array<i64: 16, 32>}]} {
    %c0_i32 = arith.constant 0 : i32
    %0 = arith.cmpi eq, %arg1, %c0_i32 : i32
    %1 = arith.extui %0 : i1 to i32
    %c0_i32_0 = arith.constant 0 : i32
    %2 = arith.cmpi ne, %1, %c0_i32_0 : i32
    scf.if %2 {
      %cst_16 = arith.constant 0.000000e+00 : f32
      %21 = vector.broadcast %cst_16 : f32 to vector<16x32xf32>
      %c0_17 = arith.constant 0 : index
      %c0_18 = arith.constant 0 : index
      %22 = vector.load %arg8[%c0_17, %c0_18] : memref<16x32xf32, #tpu.memory_space<vmem>>, vector<16x32xf32>
      tpu.vector_store %arg8[%c0_17, %c0_18], %21 {strides = array<i32>} : memref<16x32xf32, #tpu.memory_space<vmem>>, vector<16x32xf32>,
    } else {
    }
    %c0 = arith.constant 0 : index
    %c0_1 = arith.constant 0 : index
    %3 = vector.load %arg2[%c0, %c0_1] : memref<16x32xf32, #tpu.memory_space<vmem>>, vector<16x32xf32>
    %4 = arith.truncf %3 : vector<16x32xf32> to vector<16x32xbf16>
    %c0_2 = arith.constant 0 : index
    %c0_3 = arith.constant 0 : index
    %5 = vector.load %arg3[%c0_2, %c0_3] : memref<32x64xbf16, #tpu.memory_space<vmem>>, vector<32x64xbf16>
    %cst = arith.constant dense<0.000000e+00> : vector<16x64xf32>
    %6 = tpu.matmul %4, %5, %cst {dimension_numbers = #tpu.dot_dimension_numbers<[1], [0], [0], [1], [0, 0, 1, 1], [], []>} : vector<16x32xbf16>, vector<32x64xbf16>, vector<16x64xf32> -> vector<16x64xf32>
    %c0_4 = arith.constant 0 : index
    %c0_5 = arith.constant 0 : index
    %7 = vector.load %arg4[%c0_4, %c0_5] : memref<1x64xf32, #tpu.memory_space<vmem>>, vector<1x64xf32>
    %8 = vector.broadcast %7 : vector<1x64xf32> to vector<16x64xf32>
    %9 = arith.addf %6, %8 : vector<16x64xf32>
    %cst_6 = arith.constant 0.000000e+00 : f32
    %10 = vector.broadcast %cst_6 : f32 to vector<16x64xf32>
    %11 = arith.maximumf %9, %10 : vector<16x64xf32>
    %c0_7 = arith.constant 0 : index
    %c0_8 = arith.constant 0 : index
    %12 = vector.load %arg8[%c0_7, %c0_8] : memref<16x32xf32, #tpu.memory_space<vmem>>, vector<16x32xf32>
    %13 = arith.truncf %11 : vector<16x64xf32> to vector<16x64xbf16>
    %c0_9 = arith.constant 0 : index
    %c0_10 = arith.constant 0 : index
    %14 = vector.load %arg5[%c0_9, %c0_10] : memref<64x32xbf16, #tpu.memory_space<vmem>>, vector<64x32xbf16>
    %cst_11 = arith.constant dense<0.000000e+00> : vector<16x32xf32>
    %15 = tpu.matmul %13, %14, %cst_11 {dimension_numbers = #tpu.dot_dimension_numbers<[1], [0], [0], [1], [0, 0, 1, 1], [], []>} : vector<16x64xbf16>, vector<64x32xbf16>, vector<16x32xf32> -> vector<16x32xf32>
    %16 = arith.addf %12, %15 : vector<16x32xf32>
    %c0_12 = arith.constant 0 : index
    %c0_13 = arith.constant 0 : index
    %17 = vector.load %arg8[%c0_12, %c0_13] : memref<16x32xf32, #tpu.memory_space<vmem>>, vector<16x32xf32>
    tpu.vector_store %arg8[%c0_12, %c0_13], %16 {strides = array<i32>} : memref<16x32xf32, #tpu.memory_space<vmem>>, vector<16x32xf32>,
    %c0_i32_14 = arith.constant 0 : i32
    %18 = arith.cmpi eq, %arg1, %c0_i32_14 : i32
    %19 = arith.extui %18 : i1 to i32
    %c0_i32_15 = arith.constant 0 : i32
    %20 = arith.cmpi ne, %19, %c0_i32_15 : i32
    scf.if %20 {
      %c0_16 = arith.constant 0 : index
      %c0_17 = arith.constant 0 : index
      %21 = vector.load %arg8[%c0_16, %c0_17] : memref<16x32xf32, #tpu.memory_space<vmem>>, vector<16x32xf32>
      %c0_18 = arith.constant 0 : index
      %c0_19 = arith.constant 0 : index
      %22 = vector.load %arg6[%c0_18, %c0_19] : memref<1x32xf32, #tpu.memory_space<vmem>>, vector<1x32xf32>
      %23 = vector.broadcast %22 : vector<1x32xf32> to vector<16x32xf32>
      %24 = arith.addf %21, %23 : vector<16x32xf32>
      %25 = arith.truncf %24 : vector<16x32xf32> to vector<16x32xbf16>
      %c0_20 = arith.constant 0 : index
      %c0_21 = arith.constant 0 : index
      %26 = vector.load %arg7[%c0_20, %c0_21] : memref<16x32xbf16, #tpu.memory_space<vmem>>, vector<16x32xbf16>
      tpu.vector_store %arg7[%c0_20, %c0_21], %25 {strides = array<i32>} : memref<16x32xbf16, #tpu.memory_space<vmem>>, vector<16x32xbf16>,
    } else {
    }
    return
  }
  func.func @transform_0(%arg0: i32, %arg1: i32) -> (i32, i32) {
    %c0_i32 = arith.constant 0 : i32
    %c0_i32_0 = arith.constant 0 : i32
    return %arg0, %c0_i32 : i32, i32
  }
  func.func @transform_1(%arg0: i32, %arg1: i32) -> (i32, i32) {
    %c0_i32 = arith.constant 0 : i32
    %c0_i32_0 = arith.constant 0 : i32
    return %c0_i32, %arg1 : i32, i32
  }
  func.func @transform_2(%arg0: i32, %arg1: i32) -> (i32, i32) {
    %c0_i32 = arith.constant 0 : i32
    %c0_i32_0 = arith.constant 0 : i32
    return %c0_i32, %arg1 : i32, i32
  }
  func.func @transform_3(%arg0: i32, %arg1: i32) -> (i32, i32) {
    %c0_i32 = arith.constant 0 : i32
    %c0_i32_0 = arith.constant 0 : i32
    return %arg1, %c0_i32 : i32, i32
  }
  func.func @transform_4(%arg0: i32, %arg1: i32) -> (i32, i32) {
    %c0_i32 = arith.constant 0 : i32
    %c0_i32_0 = arith.constant 0 : i32
    %c0_i32_1 = arith.constant 0 : i32
    return %c0_i32, %c0_i32_0 : i32, i32
  }
  func.func @transform_5(%arg0: i32, %arg1: i32) -> (i32, i32) {
    %c0_i32 = arith.constant 0 : i32
    %c0_i32_0 = arith.constant 0 : i32
    return %arg0, %c0_i32 : i32, i32
  }
}

</mosaic_0001>

<llo_original>
// kernel: tpu_custom_call.1
$region0: #{tpu_custom_call.1}
  #allocation0 [shape = 'u32[]', space=smem, size = 0x4, offset = 0x4, fixed_abs, tag = 'smem constant byte address 0x4 - core index']
  #allocation1 [shape = 'u32[144,128]{1,0:T(1,128)}', space=vmem, size = 0x12000, scoped, tag = 'internal scratch']
  #allocation2 [shape = 'f32[16,32]{1,0:T(8,128)}', space=vmem, size = 0x2000, scoped, tag = 'scratch operand']
  %s0 = inlined_call_operand.vmem [shape: f32[16,32], index: 0, kind: input, shape index: {}]
  %s1 = inlined_call_operand.vmem [shape: bf16[32,64], index: 1, kind: input, shape index: {}]
  %s2 = inlined_call_operand.vmem [shape: f32[1,64], index: 2, kind: input, shape index: {}]
  %s3 = inlined_call_operand.vmem [shape: bf16[64,32], index: 3, kind: input, shape index: {}]
  %s4 = inlined_call_operand.vmem [shape: f32[1,32], index: 4, kind: input, shape index: {}]
  %s5 = inlined_call_operand.hbm [shape: bf16[16,32], index: 5, kind: output, shape index: {}]
  %s6 = sld [smem:[#allocation0]]
  $region38: #{tpu_custom_call.1} parent=0
    _
  %s8 = ssub.s32 1, %s6
  %s9 = scalar_select 0, %s8, %s6
  $region1: #{tpu_custom_call.1} parent=0
    #allocation3 [shape = 'u8[4096]{0}', space=vmem, size = 0x1000, scoped, tag = 'output window, operand 0, single buffered']
    #allocation4 [shape = 's32[1]{0}', space=sflag, size = 0x4, scoped, tag = 'scoped memory for tpu_custom_call.1']
    %10 = vsyncpa [#allocation4], 0
    // Predicated region
    $region2: #{tpu_custom_call.1} parent=1 // pred_check
      _
    $region3: #{tpu_custom_call.1} parent=1 // pred_check_branch
      %12 = sbr.rel (0) target = $region5
    $region4: #{tpu_custom_call.1} parent=1 // pred_region
      _
    $region5: #{tpu_custom_call.1} parent=1 // pred_fallthru
      _
    // Predicated region
    $region6: #{tpu_custom_call.1} parent=1 // pred_check
      _
    $region7: #{tpu_custom_call.1} parent=1 // pred_check_branch
      %14 = sbr.rel (0) target = $region9
    $region8: #{tpu_custom_call.1} parent=1 // pred_region
      _
    $region9: #{tpu_custom_call.1} parent=1 // pred_fallthru
      _
    // Predicated region
    $region10: #{tpu_custom_call.1} parent=1 // pred_check
      _
    $region11: #{tpu_custom_call.1} parent=1 // pred_check_branch
      %16 = sbr.rel (0) target = $region13
    $region12: #{tpu_custom_call.1} parent=1 // pred_region
      _
    $region13: #{tpu_custom_call.1} parent=1 // pred_fallthru
      _
    // Predicated region
    $region14: #{tpu_custom_call.1} parent=1 // pred_check
      _
    $region15: #{tpu_custom_call.1} parent=1 // pred_check_branch
      %18 = sbr.rel (0) target = $region17
    $region16: #{tpu_custom_call.1} parent=1 // pred_region
      _
    $region17: #{tpu_custom_call.1} parent=1 // pred_fallthru
      _
    // Predicated region
    $region18: #{tpu_custom_call.1} parent=1 // pred_check
      _
    $region19: #{tpu_custom_call.1} parent=1 // pred_check_branch
      %20 = sbr.rel (0) target = $region21
    $region20: #{tpu_custom_call.1} parent=1 // pred_region
      _
    $region21: #{tpu_custom_call.1} parent=1 // pred_fallthru
      _
    %p22 = scmp.eq.s32.totalorder 0, 0
    // Predicated region
    $region22: #{tpu_custom_call.1} parent=1 // pred_check
      %p23 = pneg %p22
    $region23: #{tpu_custom_call.1} parent=1 // pred_check_branch
      %25 = sbr.rel (%p23) target = $region25
    $region24: #{tpu_custom_call.1} parent=1 // pred_region
      %vm26 = vcmask 261120
      %27 = vst.msk [vmem:[#allocation2] sm:$0xff] %vm26, 0.0
      %28 = vst.msk [vmem:[#allocation2 + $0x8] sm:$0xff] %vm26, 0.0
    $region25: #{tpu_custom_call.1} parent=1 // pred_fallthru
      _
    %v29 = vld [vmem:[%s0] sm:$0xff]
    %v30 = vld [vmem:[%s0 + $0x8] sm:$0xff]
    %v31 = vpack.c.bf16 %v30, %v29
    %v32 = vld [vmem:[%s1] sm:$0xf]
    %v33 = vld [vmem:[%s1 + $0x4] sm:$0xf]
    %v34 = vld [vmem:[%s1 + $0x8] sm:$0xf]
    %v35 = vld [vmem:[%s1 + $0xc] sm:$0xf]
    %v36 = vld [vmem:[%s2] sm:$0x1]
    %v38 = vlaneseq
    %v39 = vshrl.u32 %v38, 7
    %v40 = vsub.s32 0, %v39
    %v41 = vrot.slane %v36, %v40
    %v47 = vunpack.c.l.b16 %v32
    %v48 = vunpack.c.l.b16 %v33
    %v49 = vunpack.c.l.b16 %v34
    %v50 = vunpack.c.l.b16 %v35
    %v51 = vpack.c.b16 %v48, %v47
    %v52 = vpack.c.b16 %v50, %v49
    %vm55 = vcmask 261120
    %v57 = vsel %vm55, %v31, 0
    %59 = vmatprep.subr.bf16.mxu0 0
    %60 = vmatpush1.bf16.msra.mxu0 %v51
    %61 = vmatprep.subr.bf16.mxu0 0
    %62 = vmatpush1.bf16.msra.mxu0 %v52
    %63 = vmatprep.subr.bf16.mxu0 0
    %64 = vmatpush1.bf16.msra.mxu0 0
    %65 = vmatprep.subr.bf16.mxu0 0
    %66 = vmatpush1.bf16.msra.mxu0 0
    %67 = vmatprep.subr.bf16.mxu0 0
    %68 = vmatpush1.bf16.msra.mxu0 0
    %69 = vmatprep.subr.bf16.mxu0 0
    %70 = vmatpush1.bf16.msra.mxu0 0
    %71 = vmatprep.subr.bf16.mxu0 0
    %72 = vmatpush1.bf16.msra.mxu0 0
    %73 = vmatprep.subr.bf16.mxu0 0
    %74 = vmatpush1.bf16.msra.mxu0 0
    %75 = vmatprep.subr.bf16.mxu0 0
    %76 = vmatpush1.bf16.msra.mxu0 0
    %77 = vmatprep.subr.bf16.mxu0 0
    %78 = vmatpush1.bf16.msra.mxu0 0
    %79 = vmatprep.subr.bf16.mxu0 0
    %80 = vmatpush1.bf16.msra.mxu0 0
    %81 = vmatprep.subr.bf16.mxu0 0
    %82 = vmatpush1.bf16.msra.mxu0 0
    %83 = vmatprep.subr.bf16.mxu0 0
    %84 = vmatpush1.bf16.msra.mxu0 0
    %85 = vmatprep.subr.bf16.mxu0 0
    %86 = vmatpush1.bf16.msra.mxu0 0
    %87 = vmatprep.subr.bf16.mxu0 0
    %88 = vmatpush1.bf16.msra.mxu0 0
    %89 = vmatprep.subr.bf16.mxu0 0
    %90 = vmatpush1.bf16.msra.mxu0 0
    %91 = vmatprep.mubr.bf16.mxu0 0
    %92 = vmatmul.mubr.bf16.gmra.mrb[0].mxu0 %v57
    %v93 = vpop.f32.mrb[0].mxu0
    %v94 = vadd.f32 %v41, %v93
    %v95 = vpop.f32.mrb[0].mxu0
    %v96 = vpop.f32.mrb[0].mxu0
    %v97 = vadd.f32 %v41, %v96
    %v98 = vpop.f32.mrb[0].mxu0
    %99 = vdwg.mxu0
    %v100 = vmax.f32 %v94, 0.0
    %v101 = vmax.f32 %v97, 0.0
    %v102 = vld [vmem:[#allocation2] sm:$0xff]
    %v103 = vld [vmem:[#allocation2 + $0x8] sm:$0xff]
    %v104 = vpack.c.bf16 %v101, %v100
    %v105 = vld [vmem:[%s3] sm:$0xf]
    %v106 = vld [vmem:[%s3 + $0x4] sm:$0xf]
    %v107 = vld [vmem:[%s3 + $0x8] sm:$0xf]
    %v108 = vld [vmem:[%s3 + $0xc] sm:$0xf]
    %v109 = vld [vmem:[%s3 + $0x10] sm:$0xf]
    %v110 = vld [vmem:[%s3 + $0x14] sm:$0xf]
    %v111 = vld [vmem:[%s3 + $0x18] sm:$0xf]
    %v112 = vld [vmem:[%s3 + $0x1c] sm:$0xf]
    %v121 = vunpack.c.l.b16 %v105
    %v122 = vunpack.c.l.b16 %v106
    %v123 = vunpack.c.l.b16 %v107
    %v124 = vunpack.c.l.b16 %v108
    %v125 = vunpack.c.l.b16 %v109
    %v126 = vunpack.c.l.b16 %v110
    %v127 = vunpack.c.l.b16 %v111
    %v128 = vunpack.c.l.b16 %v112
    %v129 = vpack.c.b16 %v122, %v121
    %v130 = vpack.c.b16 %v124, %v123
    %v131 = vpack.c.b16 %v126, %v125
    %v132 = vpack.c.b16 %v128, %v127
    %vm137 = vcmask 523264
    %v139 = vsel %vm137, %v104, 0
    %141 = vmatprep.subr.bf16.mxu0 0
    %142 = vmatpush1.bf16.msra.mxu0 %v129
    %143 = vmatprep.subr.bf16.mxu0 0
    %144 = vmatpush1.bf16.msra.mxu0 %v130
    %145 = vmatprep.subr.bf16.mxu0 0
    %146 = vmatpush1.bf16.msra.mxu0 %v131
    %147 = vmatprep.subr.bf16.mxu0 0
    %148 = vmatpush1.bf16.msra.mxu0 %v132
    %149 = vmatprep.subr.bf16.mxu0 0
    %150 = vmatpush1.bf16.msra.mxu0 0
    %151 = vmatprep.subr.bf16.mxu0 0
    %152 = vmatpush1.bf16.msra.mxu0 0
    %153 = vmatprep.subr.bf16.mxu0 0
    %154 = vmatpush1.bf16.msra.mxu0 0
    %155 = vmatprep.subr.bf16.mxu0 0
    %156 = vmatpush1.bf16.msra.mxu0 0
    %157 = vmatprep.subr.bf16.mxu0 0
    %158 = vmatpush1.bf16.msra.mxu0 0
    %159 = vmatprep.subr.bf16.mxu0 0
    %160 = vmatpush1.bf16.msra.mxu0 0
    %161 = vmatprep.subr.bf16.mxu0 0
    %162 = vmatpush1.bf16.msra.mxu0 0
    %163 = vmatprep.subr.bf16.mxu0 0
    %164 = vmatpush1.bf16.msra.mxu0 0
    %165 = vmatprep.subr.bf16.mxu0 0
    %166 = vmatpush1.bf16.msra.mxu0 0
    %167 = vmatprep.subr.bf16.mxu0 0
    %168 = vmatpush1.bf16.msra.mxu0 0
    %169 = vmatprep.subr.bf16.mxu0 0
    %170 = vmatpush1.bf16.msra.mxu0 0
    %171 = vmatprep.subr.bf16.mxu0 0
    %172 = vmatpush1.bf16.msra.mxu0 0
    %173 = vmatprep.mubr.bf16.mxu0 0
    %174 = vmatmul.mubr.bf16.gmra.mrb[0].mxu0 %v139
    %v175 = vpop.f32.mrb[0].mxu0
    %v176 = vadd.f32 0.0, %v175
    %v177 = vpop.f32.mrb[0].mxu0
    %v178 = vpop.f32.mrb[0].mxu0
    %v179 = vadd.f32 0.0, %v178
    %v180 = vpop.f32.mrb[0].mxu0
    %181 = vdwg.mxu0
    %v182 = vadd.f32 %v102, %v176
    %v183 = vadd.f32 %v103, %v179
    %184 = vst.msk [vmem:[#allocation2] sm:$0xff] %vm55, %v182
    %185 = vst.msk [vmem:[#allocation2 + $0x8] sm:$0xff] %vm55, %v183
    // Predicated region
    $region26: #{tpu_custom_call.1} parent=1 // pred_check
      %p186 = pneg %p22
    $region27: #{tpu_custom_call.1} parent=1 // pred_check_branch
      %188 = sbr.rel (%p186) target = $region29
    $region28: #{tpu_custom_call.1} parent=1 // pred_region
      %v189 = vld [vmem:[#allocation2] sm:$0xff]
      %v190 = vld [vmem:[#allocation2 + $0x8] sm:$0xff]
      %v191 = vld [vmem:[%s4] sm:$0x1]
      %v193 = vlaneseq
      %v194 = vshrl.u32 %v193, 7
      %v195 = vsub.s32 0, %v194
      %v196 = vrot.slane %v191, %v195
      %v198 = vadd.f32 %v189, %v196
      %v199 = vadd.f32 %v190, %v196
      %v200 = vpack.c.bf16 %v199, %v198
      %v202 = vunpack.c.l.b16 %v200
      %v203 = vunpack.c.h.b16 %v200
      %v204 = vpack.c.b16 %v202, %v202
      %v205 = vpack.c.b16 %v203, %v203
      %vm208 = vcmask 257024
      %209 = vst.msk [vmem:[#allocation3] sm:$0xf] %vm208, %v204
      %210 = vst.msk [vmem:[#allocation3 + $0x4] sm:$0xf] %vm208, %v205
    $region29: #{tpu_custom_call.1} parent=1 // pred_fallthru
      _
    // Predicated region
    $region30: #{tpu_custom_call.1} parent=1 // pred_check
      _
    $region31: #{tpu_custom_call.1} parent=1 // pred_check_branch
      %212 = sbr.rel (0) target = $region33
    $region32: #{tpu_custom_call.1} parent=1 // pred_region
      %s214 = ssub.s32 128, 128
      %215 = vsyncadd [#allocation4], %s214
      %s216 = sshll.u32 [#allocation3], 4
      %s217 = int_to_ptr.vmem [resolvable:$true] %s216
      %222 = dma.vmem_to_hbm [thread:$0]  %s217, 128, %s5, [#allocation4], 64, 64, 4
    $region33: #{tpu_custom_call.1} parent=1 // pred_fallthru
      _
    // Predicated region
    $region34: #{tpu_custom_call.1} parent=1 // pred_check
      _
    $region35: #{tpu_custom_call.1} parent=1 // pred_check_branch
      %224 = sbr.rel (0) target = $region37
    $region36: #{tpu_custom_call.1} parent=1 // pred_region
      %225 = dma.done [#allocation4], 128
    $region37: #{tpu_custom_call.1} parent=1 // pred_fallthru
      _
    %226 = vsyncpa [#allocation4], 1

</llo_original>
